<compile_context>
chip_gen: v5e
topology: v5e:2x2
jax: 0.10.0
libtpu: 0.0.40
codegen_flags: <defaults>
</compile_context>

<pallas_src>
import functools

import jax
import jax.numpy as jnp
from jax.experimental import pallas as pl
from jax.experimental.pallas import tpu as pltpu

EPS = 1e-5
_MIB = 1 << 20


def _vmem_capacity_bytes():
    try:
        return int(pltpu.get_tpu_info().vmem_capacity_bytes)
    except Exception:
        return 64 * _MIB  # conservative default (v7x per-TC VMEM)


def _sublane(itemsize):
    # dtype packing tile along the sublane axis
    return {4: 8, 2: 16, 1: 32}.get(int(itemsize), 8)


# ----------------------------------------------------------------------------
# One-pass kernel (data VMEM-resident per channel tile): 1 read + 1 write.
# ----------------------------------------------------------------------------
def _onepass_kernel(xr_ref, xi_ref, gb_ref, or_ref, oi_ref, *, inv_count, eps):
    """Blocks: x/out (N, c_tile, L); gb (c_tile, 4) = [gamma_r, beta_r, gamma_i, beta_i]."""
    gb = gb_ref[...].astype(jnp.float32)

    def bn(x_ref, o_ref, gamma, beta):
        x = x_ref[...].astype(jnp.float32)                       # (N, c, L)
        mean = jnp.sum(jnp.sum(x, axis=0), axis=-1, keepdims=True) * inv_count
        xc = x - mean[None]                                      # centered (stable var)
        var = jnp.sum(jnp.sum(xc * xc, axis=0), axis=-1, keepdims=True) * inv_count
        scale = gamma * jax.lax.rsqrt(var + eps)                 # (c, 1)
        o_ref[...] = (xc * scale[None] + beta[None]).astype(o_ref.dtype)

    bn(xr_ref, or_ref, gb[:, 0:1], gb[:, 1:2])
    bn(xi_ref, oi_ref, gb[:, 2:3], gb[:, 3:4])


# ----------------------------------------------------------------------------
# Streaming path kernel 1: per-channel stats + fold of gamma/beta -> scale/shift.
# ----------------------------------------------------------------------------
def _stats_kernel(xr_ref, xi_ref, gb_ref, ss_ref,
                  sum_r, sq_r, sum_i, sq_i, *, inv_count, eps):
    """x blocks (n_tile, c_tile, l_tile); gb/ss blocks (c_tile, 4).

    Accumulates lane-parallel partial sums into (c_tile, W) VMEM scratch with plain
    VPU adds; the single cross-lane reduce happens only in the fold at the last
    reduction step.  ss columns = [scale_r, shift_r, scale_i, shift_i].
    """
    n = pl.program_id(1)
    l = pl.program_id(2)
    first = jnp.logical_and(n == 0, l == 0)
    last = jnp.logical_and(n == pl.num_programs(1) - 1, l == pl.num_programs(2) - 1)

    @pl.when(first)
    def _init():
        sum_r[...] = jnp.zeros_like(sum_r)
        sq_r[...] = jnp.zeros_like(sq_r)
        sum_i[...] = jnp.zeros_like(sum_i)
        sq_i[...] = jnp.zeros_like(sq_i)

    def accumulate(x, s_ref, q_ref):
        w = s_ref.shape[-1]
        lt = x.shape[-1]
        if w == 1:
            # Fallback (huge, non-128-aligned l_tile): per-step cross-lane reduce.
            s_ref[...] += jnp.sum(jnp.sum(x, axis=0), axis=-1, keepdims=True)
            q_ref[...] += jnp.sum(jnp.sum(x * x, axis=0), axis=-1, keepdims=True)
        else:
            ps = jnp.zeros(s_ref.shape, jnp.float32)
            pq = jnp.zeros(q_ref.shape, jnp.float32)
            for j in range(lt // w):                      # static, small unroll
                c = x[:, :, j * w:(j + 1) * w]            # (n_tile, c_tile, w)
                ps = ps + jnp.sum(c, axis=0)
                pq = pq + jnp.sum(c * c, axis=0)
            s_ref[...] += ps
            q_ref[...] += pq

    xr = xr_ref[...].astype(jnp.float32)
    xi = xi_ref[...].astype(jnp.float32)
    accumulate(xr, sum_r, sq_r)
    accumulate(xi, sum_i, sq_i)

    @pl.when(last)
    def _fold():
        gb = gb_ref[...].astype(jnp.float32)              # (c_tile, 4)

        def fold_one(s_ref, q_ref, gamma, beta):
            mean = jnp.sum(s_ref[...], axis=-1, keepdims=True) * inv_count
            ex2 = jnp.sum(q_ref[...], axis=-1, keepdims=True) * inv_count
            var = jnp.maximum(ex2 - mean * mean, 0.0)     # biased variance, clamped
            scale = gamma * jax.lax.rsqrt(var + eps)
            shift = beta - mean * scale
            return scale, shift

        sc_r, sh_r = fold_one(sum_r, sq_r, gb[:, 0:1], gb[:, 1:2])
        sc_i, sh_i = fold_one(sum_i, sq_i, gb[:, 2:3], gb[:, 3:4])
        ss_ref[:, 0:1] = sc_r
        ss_ref[:, 1:2] = sh_r
        ss_ref[:, 2:3] = sc_i
        ss_ref[:, 3:4] = sh_i


# ----------------------------------------------------------------------------
# Streaming path kernel 2: apply folded scale/shift (2 VPU ops / element).
# ----------------------------------------------------------------------------
def _normalize_kernel(xr_ref, xi_ref, ss_ref, or_ref, oi_ref):
    ss = ss_ref[...]                                      # (c_tile, 4) f32
    sc_r = ss[:, 0:1][None]                               # (1, c_tile, 1)
    sh_r = ss[:, 1:2][None]
    sc_i = ss[:, 2:3][None]
    sh_i = ss[:, 3:4][None]
    xr = xr_ref[...].astype(jnp.float32)
    xi = xi_ref[...].astype(jnp.float32)
    or_ref[...] = (xr * sc_r + sh_r).astype(or_ref.dtype)
    oi_ref[...] = (xi * sc_i + sh_i).astype(oi_ref.dtype)


# ----------------------------------------------------------------------------
# Tiling heuristics.
# ----------------------------------------------------------------------------
def _choose_stream_tiles(N, C, L, itemsize, blk_target):
    sub = _sublane(itemsize)

    # Channel tile: aligned divisor of C, capped so >= 2 channel tiles exist whenever
    # C allows (keeps the "parallel" channel axis shardable across v7x's 2 TCs).
    if C % sub != 0:
        c_tile = C
    else:
        c_tile = sub
        c_cap = C // 2 if C % (2 * sub) == 0 else C
        while (c_tile * 2 <= c_cap and C % (c_tile * 2) == 0
               and c_tile * 2 * max(min(L, 2048), 128) * itemsize <= blk_target):
            c_tile *= 2

    # Length tile: full L when it fits (or cannot be split on 128-lane boundaries),
    # otherwise the largest 128-multiple divisor keeping the block under target.
    if c_tile * L * itemsize <= blk_target or L % 128 != 0:
        l_tile = L
    else:
        l_tile = 128
        while (l_tile * 2 <= L and L % (l_tile * 2) == 0
               and c_tile * l_tile * 2 * itemsize <= blk_target):
            l_tile *= 2

    # Batch tile: grow toward the byte budget (fewer grid steps, HBM-contiguous rows).
    n_tile = 1
    while (n_tile * 2 <= N and N % (n_tile * 2) == 0
           and n_tile * 2 * c_tile * l_tile * itemsize <= blk_target):
        n_tile *= 2
    return n_tile, c_tile, l_tile


def _stats_lane_width(l_tile, c_tile):
    """Lane width of the (c_tile, W) stats accumulators."""
    if l_tile % 128 == 0:
        w = l_tile
        while w > 2048 and (w // 2) % 128 == 0:   # bound chunk-unroll / scratch size
            w //= 2
        return w
    if c_tile * l_tile * 4 <= (256 << 10):        # small unaligned L: full width
        return l_tile
    return 1                                      # huge unaligned L: per-step reduce


# ----------------------------------------------------------------------------
# Public wrapper.
# ----------------------------------------------------------------------------
def ncomplex_batchnorm1d(x_real, x_imag, gamma_r, beta_r, gamma_i, beta_i,
                         eps=EPS, *, force_two_pass=False, _blk_target_bytes=None):
    """Forward of nComplexBatchNorm1d (training-mode batch statistics).

    x_real, x_imag : (N, C, L);  gamma_*, beta_* : (C,).
    Returns (out_real, out_imag), each (N, C, L), same dtype as the inputs.
    """
    assert x_real.shape == x_imag.shape
    assert x_real.ndim == 3, "expected (N, C, L) input"
    N, C, L = x_real.shape
    dtype = x_real.dtype
    itemsize = jnp.dtype(dtype).itemsize
    sub = _sublane(itemsize)

    cap = _vmem_capacity_bytes()
    vmem_ceiling = int(0.62 * cap)    # ~40 MiB on v7x (64 MiB/TC), ~79 MiB on v5e/v6e

    # gamma/beta packed into one (C, 4) f32 array: a single small DMA per channel
    # tile instead of four width-1 DMAs.  Columns = [gamma_r, beta_r, gamma_i, beta_i].
    gb = jnp.stack([gamma_r, beta_r, gamma_i, beta_i], axis=-1).astype(jnp.float32)

    inv_count = 1.0 / float(N * L)
    eps = float(eps)

    # ------------------------------------------------------------------
    # Fast path: one-pass kernel (1R + 1W per array).  Eligible whenever a whole
    # (N, c_tile, L) slab per channel tile (double-buffered in/out + f32 temps)
    # fits under the per-generation VMEM ceiling.
    # ------------------------------------------------------------------
    c_tile_1 = sub if C % sub == 0 else C
    blk_in_1 = N * c_tile_1 * L * itemsize
    blk_f32_1 = N * c_tile_1 * L * 4
    est_1 = 8 * blk_in_1 + 5 * blk_f32_1 + 4 * c_tile_1 * 128 * 4
    if (not force_two_pass) and est_1 <= vmem_ceiling:
        grid = (C // c_tile_1,)
        x_spec = pl.BlockSpec((N, c_tile_1, L), lambda c: (0, c, 0))
        gb_spec = pl.BlockSpec((c_tile_1, 4), lambda c: (c, 0))
        kernel = functools.partial(_onepass_kernel, inv_count=inv_count, eps=eps)
        return pl.pallas_call(
            kernel,
            out_shape=(jax.ShapeDtypeStruct((N, C, L), dtype),
                       jax.ShapeDtypeStruct((N, C, L), dtype)),
            grid_spec=pltpu.PrefetchScalarGridSpec(
                num_scalar_prefetch=0,
                grid=grid,
                in_specs=[x_spec, x_spec, gb_spec],
                out_specs=(x_spec, x_spec),
            ),
            compiler_params=pltpu.CompilerParams(
                dimension_semantics=("parallel",),
                vmem_limit_bytes=int(min(vmem_ceiling, max(2 * est_1, 16 * _MIB))),
            ),
        )(x_real, x_imag, gb)

    # ------------------------------------------------------------------
    # Streaming path: stats kernel (1R) + normalize kernel (1R + 1W).
    # ------------------------------------------------------------------
    blk_target = _blk_target_bytes
    if blk_target is None:
        blk_target = max(512 << 10, min(6 * _MIB, cap // 24))
    n_tile, c_tile, l_tile = _choose_stream_tiles(N, C, L, itemsize, blk_target)
    num_c, num_n, num_l = C // c_tile, N // n_tile, L // l_tile

    blk_in = n_tile * c_tile * l_tile * itemsize
    blk_f32 = n_tile * c_tile * l_tile * 4
    w = _stats_lane_width(l_tile, c_tile)
    scratch_bytes = 4 * c_tile * max(w, 128) * 4

    x_spec = pl.BlockSpec((n_tile, c_tile, l_tile), lambda c, n, l: (n, c, l))
    gb_spec = pl.BlockSpec((c_tile, 4), lambda c, n, l: (c, 0))
    ss_spec = pl.BlockSpec((c_tile, 4), lambda c, n, l: (c, 0))

    stats_kernel = functools.partial(_stats_kernel, inv_count=inv_count, eps=eps)
    est_stats = 4 * blk_in + 3 * blk_f32 + scratch_bytes + 4 * c_tile * 128 * 4
    ss = pl.pallas_call(
        stats_kernel,
        out_shape=jax.ShapeDtypeStruct((C, 4), jnp.float32),
        grid_spec=pltpu.PrefetchScalarGridSpec(
            num_scalar_prefetch=0,
            grid=(num_c, num_n, num_l),
            in_specs=[x_spec, x_spec, gb_spec],
            out_specs=ss_spec,
            scratch_shapes=[pltpu.VMEM((c_tile, w), jnp.float32) for _ in range(4)],
        ),
        compiler_params=pltpu.CompilerParams(
            dimension_semantics=("parallel", "arbitrary", "arbitrary"),
            vmem_limit_bytes=int(min(vmem_ceiling, max(2 * est_stats, 16 * _MIB))),
        ),
    )(x_real, x_imag, gb)

    est_norm = 8 * blk_in + 2 * blk_f32 + 4 * c_tile * 128 * 4
    return pl.pallas_call(
        _normalize_kernel,
        out_shape=(jax.ShapeDtypeStruct((N, C, L), dtype),
                   jax.ShapeDtypeStruct((N, C, L), dtype)),
        grid_spec=pltpu.PrefetchScalarGridSpec(
            num_scalar_prefetch=0,
            grid=(num_c, num_n, num_l),
            in_specs=[x_spec, x_spec, ss_spec],
            out_specs=(x_spec, x_spec),
        ),
        compiler_params=pltpu.CompilerParams(
            dimension_semantics=("parallel", "parallel", "parallel"),
            vmem_limit_bytes=int(min(vmem_ceiling, max(2 * est_norm, 16 * _MIB))),
        ),
    )(x_real, x_imag, ss)


# ----------------------------------------------------------------------------
# Reference + tests.
# ----------------------------------------------------------------------------
def _reference(x, gamma, beta, eps=EPS):
    """Pure-JAX BatchNorm1d (training-mode biased batch statistics)."""
    mean = jnp.mean(x, axis=(0, 2), keepdims=True)
    var = jnp.mean((x - mean) ** 2, axis=(0, 2), keepdims=True)
    xhat = (x - mean) / jnp.sqrt(var + eps)
    return gamma.reshape(1, -1, 1) * xhat + beta.reshape(1, -1, 1)


def _run_case(key, N, C, L, **kwargs):
    k1, k2, k3, k4, k5, k6 = jax.random.split(key, 6)
    x_real = jax.random.normal(k1, (N, C, L), dtype=jnp.float32)
    x_imag = jax.random.normal(k2, (N, C, L), dtype=jnp.float32)
    gamma_r = 1.0 + 0.1 * jax.random.normal(k3, (C,), dtype=jnp.float32)
    beta_r = 0.1 * jax.random.normal(k4, (C,), dtype=jnp.float32)
    gamma_i = 1.0 + 0.1 * jax.random.normal(k5, (C,), dtype=jnp.float32)
    beta_i = 0.1 * jax.random.normal(k6, (C,), dtype=jnp.float32)

    out_r, out_i = ncomplex_batchnorm1d(
        x_real, x_imag, gamma_r, beta_r, gamma_i, beta_i, **kwargs)
    jax.block_until_ready(out_r)
    jax.block_until_ready(out_i)

    ref_r = _reference(x_real, gamma_r, beta_r)
    ref_i = _reference(x_imag, gamma_i, beta_i)
    assert jnp.allclose(out_r, ref_r, atol=1e-4, rtol=1e-4)
    assert jnp.allclose(out_i, ref_i, atol=1e-4, rtol=1e-4)


if __name__ == "__main__":
    key = jax.random.PRNGKey(0)
    keys = jax.random.split(key, 4)

    # One-pass (VMEM-resident) path; C not a multiple of 8.
    _run_case(keys[0], N=2, C=4, L=16)
    # One-pass path; sublane/lane-aligned shapes, 2 channel tiles (megacore-friendly).
    _run_case(keys[1], N=3, C=16, L=128)
    # Streaming stats + normalize path (forced), single reduction step per channel tile.
    _run_case(keys[2], N=2, C=4, L=16, force_two_pass=True)
    # Streaming path with multiple batch/length reduction steps (tiny forced block
    # target exercises accumulate/init/fold and the L-tiled grid).
    _run_case(keys[3], N=4, C=16, L=256, force_two_pass=True,
              _blk_target_bytes=8 * 128 * 4)

    print("KERNEL_OK")
</pallas_src>

<mosaic_0001>
module attributes {stable_mosaic.version = 11 : i64} {
  func.func @_onepass_kernel(%arg0: i32, %arg1: memref<2x4x16xf32, #tpu.memory_space<vmem>>, %arg2: memref<2x4x16xf32, #tpu.memory_space<vmem>>, %arg3: memref<4x4xf32, #tpu.memory_space<vmem>>, %arg4: memref<2x4x16xf32, #tpu.memory_space<vmem>>, %arg5: memref<2x4x16xf32, #tpu.memory_space<vmem>>) attributes {dimension_semantics = [#tpu.dimension_semantics<parallel>], iteration_bounds = array<i64: 1>, scalar_prefetch = 0 : i64, scratch_operands = 0 : i64, tpu.core_type = #tpu.core_type<tc>, window_params = [{transform_indices = @transform_0, window_bounds = array<i64: 2, 4, 16>}, {transform_indices = @transform_1, window_bounds = array<i64: 2, 4, 16>}, {transform_indices = @transform_2, window_bounds = array<i64: 4, 4>}, {transform_indices = @transform_3, window_bounds = array<i64: 2, 4, 16>}, {transform_indices = @transform_4, window_bounds = array<i64: 2, 4, 16>}]} {
    %c0 = arith.constant 0 : index
    %c0_0 = arith.constant 0 : index
    %0 = vector.load %arg3[%c0, %c0_0] : memref<4x4xf32, #tpu.memory_space<vmem>>, vector<4x4xf32>
    %1 = vector.extract_strided_slice %0 {offsets = [0, 0], sizes = [4, 1], strides = [1, 1]} : vector<4x4xf32> to vector<4x1xf32>
    %2 = vector.extract_strided_slice %0 {offsets = [0, 1], sizes = [4, 1], strides = [1, 1]} : vector<4x4xf32> to vector<4x1xf32>
    %c0_1 = arith.constant 0 : index
    %c0_2 = arith.constant 0 : index
    %c0_3 = arith.constant 0 : index
    %3 = vector.load %arg1[%c0_1, %c0_2, %c0_3] : memref<2x4x16xf32, #tpu.memory_space<vmem>>, vector<2x4x16xf32>
    %cst = arith.constant dense<0.000000e+00> : vector<4x16xf32>
    %4 = vector.multi_reduction <add>, %3, %cst [0] : vector<2x4x16xf32> to vector<4x16xf32>
    %cst_4 = arith.constant dense<0.000000e+00> : vector<4xf32>
    %5 = vector.multi_reduction <add>, %4, %cst_4 [1] : vector<4x16xf32> to vector<4xf32>
    %6 = vector.shape_cast %5 : vector<4xf32> to vector<4x1xf32>
    %cst_5 = arith.constant 3.125000e-02 : f32
    %7 = vector.broadcast %cst_5 : f32 to vector<4x1xf32>
    %8 = arith.mulf %6, %7 : vector<4x1xf32>
    %9 = vector.shape_cast %8 : vector<4x1xf32> to vector<1x4x1xf32>
    %10 = vector.broadcast %9 : vector<1x4x1xf32> to vector<2x4x16xf32>
    %11 = arith.subf %3, %10 : vector<2x4x16xf32>
    %12 = arith.mulf %11, %11 : vector<2x4x16xf32>
    %cst_6 = arith.constant dense<0.000000e+00> : vector<4x16xf32>
    %13 = vector.multi_reduction <add>, %12, %cst_6 [0] : vector<2x4x16xf32> to vector<4x16xf32>
    %cst_7 = arith.constant dense<0.000000e+00> : vector<4xf32>
    %14 = vector.multi_reduction <add>, %13, %cst_7 [1] : vector<4x16xf32> to vector<4xf32>
    %15 = vector.shape_cast %14 : vector<4xf32> to vector<4x1xf32>
    %cst_8 = arith.constant 3.125000e-02 : f32
    %16 = vector.broadcast %cst_8 : f32 to vector<4x1xf32>
    %17 = arith.mulf %15, %16 : vector<4x1xf32>
    %cst_9 = arith.constant 9.99999974E-6 : f32
    %18 = vector.broadcast %cst_9 : f32 to vector<4x1xf32>
    %19 = arith.addf %17, %18 : vector<4x1xf32>
    %20 = math.rsqrt %19 : vector<4x1xf32>
    %21 = arith.mulf %1, %20 : vector<4x1xf32>
    %22 = vector.shape_cast %21 : vector<4x1xf32> to vector<1x4x1xf32>
    %23 = vector.broadcast %22 : vector<1x4x1xf32> to vector<2x4x16xf32>
    %24 = arith.mulf %11, %23 : vector<2x4x16xf32>
    %25 = vector.shape_cast %2 : vector<4x1xf32> to vector<1x4x1xf32>
    %26 = vector.broadcast %25 : vector<1x4x1xf32> to vector<2x4x16xf32>
    %27 = arith.addf %24, %26 : vector<2x4x16xf32>
    %c0_10 = arith.constant 0 : index
    %c0_11 = arith.constant 0 : index
    %c0_12 = arith.constant 0 : index
    %28 = vector.load %arg4[%c0_10, %c0_11, %c0_12] : memref<2x4x16xf32, #tpu.memory_space<vmem>>, vector<2x4x16xf32>
    tpu.vector_store %arg4[%c0_10, %c0_11, %c0_12], %27 {strides = array<i32>} : memref<2x4x16xf32, #tpu.memory_space<vmem>>, vector<2x4x16xf32>,
    %29 = vector.extract_strided_slice %0 {offsets = [0, 2], sizes = [4, 1], strides = [1, 1]} : vector<4x4xf32> to vector<4x1xf32>
    %30 = vector.extract_strided_slice %0 {offsets = [0, 3], sizes = [4, 1], strides = [1, 1]} : vector<4x4xf32> to vector<4x1xf32>
    %c0_13 = arith.constant 0 : index
    %c0_14 = arith.constant 0 : index
    %c0_15 = arith.constant 0 : index
    %31 = vector.load %arg2[%c0_13, %c0_14, %c0_15] : memref<2x4x16xf32, #tpu.memory_space<vmem>>, vector<2x4x16xf32>
    %cst_16 = arith.constant dense<0.000000e+00> : vector<4x16xf32>
    %32 = vector.multi_reduction <add>, %31, %cst_16 [0] : vector<2x4x16xf32> to vector<4x16xf32>
    %cst_17 = arith.constant dense<0.000000e+00> : vector<4xf32>
    %33 = vector.multi_reduction <add>, %32, %cst_17 [1] : vector<4x16xf32> to vector<4xf32>
    %34 = vector.shape_cast %33 : vector<4xf32> to vector<4x1xf32>
    %cst_18 = arith.constant 3.125000e-02 : f32
    %35 = vector.broadcast %cst_18 : f32 to vector<4x1xf32>
    %36 = arith.mulf %34, %35 : vector<4x1xf32>
    %37 = vector.shape_cast %36 : vector<4x1xf32> to vector<1x4x1xf32>
    %38 = vector.broadcast %37 : vector<1x4x1xf32> to vector<2x4x16xf32>
    %39 = arith.subf %31, %38 : vector<2x4x16xf32>
    %40 = arith.mulf %39, %39 : vector<2x4x16xf32>
    %cst_19 = arith.constant dense<0.000000e+00> : vector<4x16xf32>
    %41 = vector.multi_reduction <add>, %40, %cst_19 [0] : vector<2x4x16xf32> to vector<4x16xf32>
    %cst_20 = arith.constant dense<0.000000e+00> : vector<4xf32>
    %42 = vector.multi_reduction <add>, %41, %cst_20 [1] : vector<4x16xf32> to vector<4xf32>
    %43 = vector.shape_cast %42 : vector<4xf32> to vector<4x1xf32>
    %cst_21 = arith.constant 3.125000e-02 : f32
    %44 = vector.broadcast %cst_21 : f32 to vector<4x1xf32>
    %45 = arith.mulf %43, %44 : vector<4x1xf32>
    %cst_22 = arith.constant 9.99999974E-6 : f32
    %46 = vector.broadcast %cst_22 : f32 to vector<4x1xf32>
    %47 = arith.addf %45, %46 : vector<4x1xf32>
    %48 = math.rsqrt %47 : vector<4x1xf32>
    %49 = arith.mulf %29, %48 : vector<4x1xf32>
    %50 = vector.shape_cast %49 : vector<4x1xf32> to vector<1x4x1xf32>
    %51 = vector.broadcast %50 : vector<1x4x1xf32> to vector<2x4x16xf32>
    %52 = arith.mulf %39, %51 : vector<2x4x16xf32>
    %53 = vector.shape_cast %30 : vector<4x1xf32> to vector<1x4x1xf32>
    %54 = vector.broadcast %53 : vector<1x4x1xf32> to vector<2x4x16xf32>
    %55 = arith.addf %52, %54 : vector<2x4x16xf32>
    %c0_23 = arith.constant 0 : index
    %c0_24 = arith.constant 0 : index
    %c0_25 = arith.constant 0 : index
    %56 = vector.load %arg5[%c0_23, %c0_24, %c0_25] : memref<2x4x16xf32, #tpu.memory_space<vmem>>, vector<2x4x16xf32>
    tpu.vector_store %arg5[%c0_23, %c0_24, %c0_25], %55 {strides = array<i32>} : memref<2x4x16xf32, #tpu.memory_space<vmem>>, vector<2x4x16xf32>,
    return
  }
  func.func @transform_0(%arg0: i32) -> (i32, i32, i32) {
    %c0_i32 = arith.constant 0 : i32
    %c0_i32_0 = arith.constant 0 : i32
    %c0_i32_1 = arith.constant 0 : i32
    return %c0_i32, %arg0, %c0_i32_0 : i32, i32, i32
  }
  func.func @transform_1(%arg0: i32) -> (i32, i32, i32) {
    %c0_i32 = arith.constant 0 : i32
    %c0_i32_0 = arith.constant 0 : i32
    %c0_i32_1 = arith.constant 0 : i32
    return %c0_i32, %arg0, %c0_i32_0 : i32, i32, i32
  }
  func.func @transform_2(%arg0: i32) -> (i32, i32) {
    %c0_i32 = arith.constant 0 : i32
    %c0_i32_0 = arith.constant 0 : i32
    return %arg0, %c0_i32 : i32, i32
  }
  func.func @transform_3(%arg0: i32) -> (i32, i32, i32) {
    %c0_i32 = arith.constant 0 : i32
    %c0_i32_0 = arith.constant 0 : i32
    %c0_i32_1 = arith.constant 0 : i32
    return %c0_i32, %arg0, %c0_i32_0 : i32, i32, i32
  }
  func.func @transform_4(%arg0: i32) -> (i32, i32, i32) {
    %c0_i32 = arith.constant 0 : i32
    %c0_i32_0 = arith.constant 0 : i32
    %c0_i32_1 = arith.constant 0 : i32
    return %c0_i32, %arg0, %c0_i32_0 : i32, i32, i32
  }
}

</mosaic_0001>

<llo_original>
// kernel: tpu_custom_call.1
$region0: #{tpu_custom_call.1}
  #allocation0 [shape = 'u32[]', space=smem, size = 0x4, offset = 0x4, fixed_abs, tag = 'smem constant byte address 0x4 - core index']
  #allocation1 [shape = 'u32[72,128]{1,0:T(1,128)}', space=vmem, size = 0x9000, scoped, tag = 'internal scratch']
  %s0 = inlined_call_operand.hbm [shape: f32[2,4,16], index: 0, kind: input, shape index: {}]
  %s1 = inlined_call_operand.hbm [shape: f32[2,4,16], index: 1, kind: input, shape index: {}]
  %s2 = inlined_call_operand.hbm [shape: f32[4,4], index: 2, kind: input, shape index: {}]
  %s3 = inlined_call_operand.hbm [shape: f32[2,4,16], index: 3, kind: output, shape index: {0}]
  %s4 = inlined_call_operand.hbm [shape: f32[2,4,16], index: 4, kind: output, shape index: {1}]
  %5 = xla_tuple %s3, %s4
  %s6 = sld [smem:[#allocation0]]
  $region42: #{tpu_custom_call.1} parent=0
    _
  %s8 = ssub.s32 1, %s6
  %s9 = scalar_select 0, %s8, %s6
  $region1: #{tpu_custom_call.1} parent=0
    #allocation2 [shape = 'u8[4096]{0}', space=vmem, size = 0x1000, scoped, tag = 'input window, operand 0, single buffered']
    #allocation3 [shape = 's32[1]{0}', space=sflag, size = 0x4, scoped, tag = 'scoped memory for tpu_custom_call.1']
    #allocation4 [shape = 's32[1]{0}', space=sflag, size = 0x4, scoped, tag = 'scoped memory for tpu_custom_call.1']
    #allocation5 [shape = 'u8[4096]{0}', space=vmem, size = 0x1000, scoped, tag = 'input window, operand 1, single buffered']
    #allocation6 [shape = 's32[1]{0}', space=sflag, size = 0x4, scoped, tag = 'scoped memory for tpu_custom_call.1']
    #allocation7 [shape = 'u8[2048]{0}', space=vmem, size = 0x800, scoped, tag = 'input window, operand 2, single buffered']
    #allocation8 [shape = 'u8[4096]{0}', space=vmem, size = 0x1000, scoped, tag = 'output window, operand 0, single buffered']
    #allocation9 [shape = 'u8[4096]{0}', space=vmem, size = 0x1000, scoped, tag = 'output window, operand 1, single buffered']
    #allocation10 [shape = 's32[1]{0}', space=sflag, size = 0x4, scoped, tag = 'scoped memory for tpu_custom_call.1']
    %10 = vsyncpa [#allocation3], 0
    %11 = vsyncpa [#allocation6], 0
    %12 = vsyncpa [#allocation4], 0
    %13 = vsyncpa [#allocation10], 0
    // Predicated region
    $region2: #{tpu_custom_call.1} parent=1 // pred_check
      _
    $region3: #{tpu_custom_call.1} parent=1 // pred_check_branch
      %15 = sbr.rel (0) target = $region5
    $region4: #{tpu_custom_call.1} parent=1 // pred_region
      %17 = vsyncadd [#allocation3], 0
      %s18 = sshll.u32 %s0, 4
      %s19 = int_to_ptr.hbm [resolvable:$true] %s18
      %s20 = sshll.u32 [#allocation2], 4
      %s21 = int_to_ptr.vmem [resolvable:$true] %s20
      %26 = dma.hbm_to_vmem [thread:$0]  %s19, 128, %s21, [#allocation3], 64, 64, 4
    $region5: #{tpu_custom_call.1} parent=1 // pred_fallthru
      _
    // Predicated region
    $region6: #{tpu_custom_call.1} parent=1 // pred_check
      _
    $region7: #{tpu_custom_call.1} parent=1 // pred_check_branch
      %28 = sbr.rel (0) target = $region9
    $region8: #{tpu_custom_call.1} parent=1 // pred_region
      %30 = vsyncadd [#allocation6], 0
      %s31 = sshll.u32 %s1, 4
      %s32 = int_to_ptr.hbm [resolvable:$true] %s31
      %s33 = sshll.u32 [#allocation5], 4
      %s34 = int_to_ptr.vmem [resolvable:$true] %s33
      %39 = dma.hbm_to_vmem [thread:$0]  %s32, 128, %s34, [#allocation6], 64, 64, 4
    $region9: #{tpu_custom_call.1} parent=1 // pred_fallthru
      _
    // Predicated region
    $region10: #{tpu_custom_call.1} parent=1 // pred_check
      _
    $region11: #{tpu_custom_call.1} parent=1 // pred_check_branch
      %41 = sbr.rel (0) target = $region13
    $region12: #{tpu_custom_call.1} parent=1 // pred_region
      %43 = vsyncadd [#allocation6], 0
      %s45 = sshll.u32 %s2, 4
      %s46 = int_to_ptr.hbm [resolvable:$true] %s45
      %s47 = sshll.u32 [#allocation7], 4
      %s48 = int_to_ptr.vmem [resolvable:$true] %s47
      %50 = dma.hbm_to_vmem [thread:$0]  %s46, 64, %s48, [#allocation6]
    $region13: #{tpu_custom_call.1} parent=1 // pred_fallthru
      _
    // Predicated region
    $region14: #{tpu_custom_call.1} parent=1 // pred_check
      _
    $region15: #{tpu_custom_call.1} parent=1 // pred_check_branch
      %52 = sbr.rel (0) target = $region17
    $region16: #{tpu_custom_call.1} parent=1 // pred_region
      %54 = dma.done [#allocation3], 128
    $region17: #{tpu_custom_call.1} parent=1 // pred_fallthru
      _
    // Predicated region
    $region18: #{tpu_custom_call.1} parent=1 // pred_check
      _
    $region19: #{tpu_custom_call.1} parent=1 // pred_check_branch
      %56 = sbr.rel (0) target = $region21
    $region20: #{tpu_custom_call.1} parent=1 // pred_region
      %58 = dma.done [#allocation6], 128
    $region21: #{tpu_custom_call.1} parent=1 // pred_fallthru
      _
    // Predicated region
    $region22: #{tpu_custom_call.1} parent=1 // pred_check
      _
    $region23: #{tpu_custom_call.1} parent=1 // pred_check_branch
      %60 = sbr.rel (0) target = $region25
    $region24: #{tpu_custom_call.1} parent=1 // pred_region
      %62 = dma.done [#allocation6], 64
    $region25: #{tpu_custom_call.1} parent=1 // pred_fallthru
      _
    %v63 = vld [vmem:[#allocation7] sm:$0xf]
    %v64 = vld [vmem:[#allocation2] sm:$0xf]
    %v65 = vld [vmem:[#allocation2 + $0x4] sm:$0xf]
    %vm66 = vcmask 125952
    %v67 = vsel %vm66, %v64, 0.0
    %v68 = vsel %vm66, %v65, 0.0
    %v69 = vadd.f32 %v67, %v68
    %v70 = vsel %vm66, %v69, 0.0
    %71 = vadd.xlane.f32.xlu0 %v70
    %v72 = vpop.xlane.xlu0 %71
    %v73 = vmul.f32 %v72, 0.03125
    %v74 = vsub.f32 %v64, %v73
    %v75 = vsub.f32 %v65, %v73
    %v76 = vmul.f32 %v74, %v74
    %v77 = vmul.f32 %v75, %v75
    %v78 = vsel %vm66, %v76, 0.0
    %v79 = vsel %vm66, %v77, 0.0
    %v80 = vadd.f32 %v78, %v79
    %v81 = vsel %vm66, %v80, 0.0
    %82 = vadd.xlane.f32.xlu0 %v81
    %v83 = vpop.xlane.xlu0 %82
    %v84 = vmul.f32 %v83, 0.03125
    %v85 = vadd.f32 %v84, 1e-05
    %v86 = vrsqrt.pop %v85
    %v87 = vmul.f32 %v86, %v85
    %v88 = vmul.f32 %v87, %v86
    %v89 = vmul.f32 0.5, %v88
    %v90 = vsub.f32 1.5, %v89
    %v91 = vmul.f32 %v86, %v90
    %vm92 = vweird.f32 %v85
    %vm93 = vweird.f32 %v86
    %vm94 = vmor %vm92, %vm93
    %v95 = vsel %vm94, %v86, %v91
    %v96 = vmul.f32 %v63, %v95
    %98 = vset.pattern.permute.xlu0 0
    %99 = vperm.xlu0 %98, %v96
    %v100 = vpop.permute.xlu0 %99
    %v102 = vmul.f32 %v74, %v100
    %v103 = vmul.f32 %v75, %v100
    %105 = vset.pattern.permute.xlu0 1
    %106 = vperm.xlu0 %105, %v63
    %v107 = vpop.permute.xlu0 %106
    %v109 = vadd.f32 %v102, %v107
    %v110 = vadd.f32 %v103, %v107
    %111 = vst.msk [vmem:[#allocation8] sm:$0xf] %vm66, %v109
    %112 = vst.msk [vmem:[#allocation8 + $0x4] sm:$0xf] %vm66, %v110
    %v113 = vld [vmem:[#allocation5] sm:$0xf]
    %v114 = vld [vmem:[#allocation5 + $0x4] sm:$0xf]
    %v115 = vsel %vm66, %v113, 0.0
    %v116 = vsel %vm66, %v114, 0.0
    %v117 = vadd.f32 %v115, %v116
    %v118 = vsel %vm66, %v117, 0.0
    %119 = vadd.xlane.f32.xlu0 %v118
    %v120 = vpop.xlane.xlu0 %119
    %v121 = vmul.f32 %v120, 0.03125
    %v122 = vsub.f32 %v113, %v121
    %v123 = vsub.f32 %v114, %v121
    %v124 = vmul.f32 %v122, %v122
    %v125 = vmul.f32 %v123, %v123
    %v126 = vsel %vm66, %v124, 0.0
    %v127 = vsel %vm66, %v125, 0.0
    %v128 = vadd.f32 %v126, %v127
    %v129 = vsel %vm66, %v128, 0.0
    %130 = vadd.xlane.f32.xlu0 %v129
    %v131 = vpop.xlane.xlu0 %130
    %v132 = vmul.f32 %v131, 0.03125
    %v133 = vadd.f32 %v132, 1e-05
    %v134 = vrsqrt.pop %v133
    %v135 = vmul.f32 %v134, %v133
    %v136 = vmul.f32 %v135, %v134
    %v137 = vmul.f32 0.5, %v136
    %v138 = vsub.f32 1.5, %v137
    %v139 = vmul.f32 %v134, %v138
    %vm140 = vweird.f32 %v133
    %vm141 = vweird.f32 %v134
    %vm142 = vmor %vm140, %vm141
    %v143 = vsel %vm142, %v134, %v139
    %v144 = vmul.f32 %v63, %v143
    %146 = vset.pattern.permute.xlu0 2
    %147 = vperm.xlu0 %146, %v144
    %v148 = vpop.permute.xlu0 %147
    %v150 = vmul.f32 %v122, %v148
    %v151 = vmul.f32 %v123, %v148
    %152 = vset.pattern.permute.xlu0 3
    %153 = vperm.xlu0 %152, %v63
    %v154 = vpop.permute.xlu0 %153
    %v156 = vadd.f32 %v150, %v154
    %v157 = vadd.f32 %v151, %v154
    %158 = vst.msk [vmem:[#allocation9] sm:$0xf] %vm66, %v156
    %159 = vst.msk [vmem:[#allocation9 + $0x4] sm:$0xf] %vm66, %v157
    // Predicated region
    $region26: #{tpu_custom_call.1} parent=1 // pred_check
      _
    $region27: #{tpu_custom_call.1} parent=1 // pred_check_branch
      %161 = sbr.rel (0) target = $region29
    $region28: #{tpu_custom_call.1} parent=1 // pred_region
      %163 = vsyncadd [#allocation4], 0
      %s164 = sshll.u32 [#allocation8], 4
      %s165 = int_to_ptr.vmem [resolvable:$true] %s164
      %s166 = sshll.u32 %s3, 4
      %s167 = int_to_ptr.hbm [resolvable:$true] %s166
      %172 = dma.vmem_to_hbm [thread:$0]  %s165, 128, %s167, [#allocation4], 64, 64, 4
    $region29: #{tpu_custom_call.1} parent=1 // pred_fallthru
      _
    // Predicated region
    $region30: #{tpu_custom_call.1} parent=1 // pred_check
      _
    $region31: #{tpu_custom_call.1} parent=1 // pred_check_branch
      %174 = sbr.rel (0) target = $region33
    $region32: #{tpu_custom_call.1} parent=1 // pred_region
      %176 = vsyncadd [#allocation10], 0
      %s177 = sshll.u32 [#allocation9], 4
      %s178 = int_to_ptr.vmem [resolvable:$true] %s177
      %s179 = sshll.u32 %s4, 4
      %s180 = int_to_ptr.hbm [resolvable:$true] %s179
      %185 = dma.vmem_to_hbm [thread:$0]  %s178, 128, %s180, [#allocation10], 64, 64, 4
    $region33: #{tpu_custom_call.1} parent=1 // pred_fallthru
      _
    // Predicated region
    $region34: #{tpu_custom_call.1} parent=1 // pred_check
      _
    $region35: #{tpu_custom_call.1} parent=1 // pred_check_branch
      %187 = sbr.rel (0) target = $region37
    $region36: #{tpu_custom_call.1} parent=1 // pred_region
      %189 = dma.done [#allocation4], 128
    $region37: #{tpu_custom_call.1} parent=1 // pred_fallthru
      _
    // Predicated region
    $region38: #{tpu_custom_call.1} parent=1 // pred_check
      _
    $region39: #{tpu_custom_call.1} parent=1 // pred_check_branch
      %191 = sbr.rel (0) target = $region41
    $region40: #{tpu_custom_call.1} parent=1 // pred_region
      %193 = dma.done [#allocation10], 128
    $region41: #{tpu_custom_call.1} parent=1 // pred_fallthru
      _
    %194 = vsyncpa [#allocation3], 1
    %195 = vsyncpa [#allocation6], 1
    %196 = vsyncpa [#allocation4], 1
    %197 = vsyncpa [#allocation10], 1

</llo_original>
